<compile_context>
chip_gen: v7x
topology: tpu7x:2x2x1
jax: 0.10.0
libtpu: 0.0.40
codegen_flags: <defaults>
</compile_context>

<pallas_src>
import jax
import jax.numpy as jnp
from jax.experimental import pallas as pl
from jax.experimental.pallas import tpu as pltpu


# ---------------------------------------------------------------------------
# Materializing copy kernel (only used when a fresh output buffer is wanted).
# ---------------------------------------------------------------------------
def _quant_act_copy_kernel(x_ref, o_ref):
    o_ref[...] = x_ref[...]


def _sublane_multiple(itemsize):
    # Sub-32-bit dtypes pack along sublanes: keep row tiles fully packed.
    return {4: 8, 2: 16, 1: 32}.get(int(itemsize), 8)


def _lane_dense_layout(shape):
    """Pick a (rows, cols) 2-D view with cols a large multiple of 128.

    Prefers a factorization that also leaves rows >= 8 so vreg sublanes are
    fully used and the row grid can have multiple steps.
    """
    n = 1
    for d in shape:
        n *= int(d)
    candidates = (4096, 2048, 1024, 512, 256, 128)
    # First pass: largest cols that still leaves rows >= 8.
    for cols in candidates:
        if n % cols == 0 and (n // cols) >= 8:
            return n // cols, cols
    # Second pass: any 128-multiple that divides n.
    for cols in candidates:
        if n % cols == 0:
            return n // cols, cols
    # Fallback: keep the original trailing dim as the lane dim (full extent).
    cols = int(shape[-1]) if len(shape) else 1
    return n // cols, cols


def _pick_row_tile(rows, cols, itemsize):
    """Choose the row-tile size tr and a VMEM limit for the copy kernel."""
    sub = _sublane_multiple(itemsize)
    row_bytes = cols * itemsize

    # ~4 MiB blocks: near the measured HBM roofline knee, and 4 * 4 MiB = 16 MiB
    # double-buffered (in + out) working set fits v7x's 32 MiB scoped default.
    target_block_bytes = 4 * 1024 * 1024
    vmem_cap = 32 * 1024 * 1024          # do not exceed on v7x (64 MiB VMEM)
    headroom = 2 * 1024 * 1024

    if rows <= sub:
        tr = rows                         # full extent (allowed even if < 8)
    else:
        tr = (target_block_bytes // row_bytes) // sub * sub
        tr = max(sub, min(rows, tr))

        # Guard: keep the double-buffered working set under the VMEM cap even
        # for huge / awkward trailing dims.
        max_tr_by_vmem = ((vmem_cap - headroom) // (4 * row_bytes)) // sub * sub
        if max_tr_by_vmem >= sub:
            tr = min(tr, max_tr_by_vmem)

        # If everything fits in one block, split it so the "parallel" row axis
        # has >= 2 steps (lets v7x's second TensorCore participate).
        if tr >= rows and rows >= 2 * sub:
            tr = ((rows + 1) // 2 + sub - 1) // sub * sub
            tr = min(tr, rows)

        # Prefer a tr that divides rows (avoids a masked partial last block).
        if rows % tr != 0:
            t = tr
            while t >= sub:
                if rows % t == 0:
                    tr = t
                    break
                t -= sub

    working_set = 4 * tr * row_bytes      # 2 in-bufs + 2 out-bufs
    vmem_limit = min(max(working_set + headroom, 8 * 1024 * 1024), vmem_cap)
    return tr, vmem_limit


def _quant_act_copy(x):
    orig_shape, dtype = x.shape, x.dtype
    itemsize = jnp.dtype(dtype).itemsize
    rows, cols = _lane_dense_layout(orig_shape)
    x2d = x.reshape(rows, cols)

    tr, vmem_limit = _pick_row_tile(rows, cols, itemsize)
    grid = (pl.cdiv(rows, tr),)

    out2d = pl.pallas_call(
        _quant_act_copy_kernel,
        out_shape=jax.ShapeDtypeStruct((rows, cols), dtype),
        grid=grid,
        in_specs=[pl.BlockSpec((tr, cols), lambda i: (i, 0))],
        out_specs=pl.BlockSpec((tr, cols), lambda i: (i, 0)),
        compiler_params=pltpu.CompilerParams(
            dimension_semantics=("parallel",),   # shard rows across TCs (v7x)
            vmem_limit_bytes=vmem_limit,
        ),
        cost_estimate=pl.CostEstimate(
            flops=0, transcendentals=0, bytes_accessed=2 * x.nbytes),
    )(x2d)
    return out2d.reshape(orig_shape)


# ---------------------------------------------------------------------------
# Public wrapper (matches QuantAct.forward semantics: identity).
# ---------------------------------------------------------------------------
def quant_act(x, scale=None, *, bit=8, quant_mode=True, materialize=False):
    """Pallas implementation of QuantAct.forward: returns x unchanged.

    `scale`, `bit`, `quant_mode` are accepted for API parity but unused,
    matching the PyTorch reference. The default path is a pure identity and
    is short-circuited (no kernel launch, no data movement). Pass
    materialize=True to force a fresh, copied buffer via a tiled lane-dense
    Pallas copy kernel.
    """
    del scale, bit, quant_mode
    if not materialize:
        # Fastest possible identity on every TPU generation: no custom call,
        # no fusion barrier, no HBM traffic.
        return x
    return _quant_act_copy(x)


if __name__ == "__main__":
    key = jax.random.PRNGKey(0)
    # Small NCHW input consistent with a conv/activation feature map.
    x = jax.random.normal(key, (2, 4, 16, 16), dtype=jnp.float32)

    # QuantAct(bit=8).forward(x, scale=None) -> x  (zero-overhead identity)
    y = quant_act(x, scale=None, bit=8, quant_mode=True)
    jax.block_until_ready(y)
    assert y.shape == x.shape and y.dtype == x.dtype
    assert bool(jnp.all(y == x))

    # Materializing path exercises the tiled, lane-dense Pallas copy kernel.
    y2 = quant_act(x, scale=None, bit=8, quant_mode=True, materialize=True)
    jax.block_until_ready(y2)
    assert y2.shape == x.shape and y2.dtype == x.dtype
    assert bool(jnp.all(y2 == x))

    print("KERNEL_OK")
</pallas_src>

<mosaic_0001>
module attributes {stable_mosaic.version = 11 : i64} {
  func.func @_quant_act_copy_kernel(%arg0: i32, %arg1: memref<8x256xf32, #tpu.memory_space<vmem>>, %arg2: memref<8x256xf32, #tpu.memory_space<vmem>>) attributes {dimension_semantics = [#tpu.dimension_semantics<parallel>], iteration_bounds = array<i64: 1>, scalar_prefetch = 0 : i64, scratch_operands = 0 : i64, tpu.core_type = #tpu.core_type<tc>, window_params = [{transform_indices = @transform_0, window_bounds = array<i64: 8, 256>}, {transform_indices = @transform_1, window_bounds = array<i64: 8, 256>}]} {
    %c0 = arith.constant 0 : index
    %c0_0 = arith.constant 0 : index
    %0 = vector.load %arg1[%c0, %c0_0] : memref<8x256xf32, #tpu.memory_space<vmem>>, vector<8x256xf32>
    %c0_1 = arith.constant 0 : index
    %c0_2 = arith.constant 0 : index
    %1 = vector.load %arg2[%c0_1, %c0_2] : memref<8x256xf32, #tpu.memory_space<vmem>>, vector<8x256xf32>
    tpu.vector_store %arg2[%c0_1, %c0_2], %0 {strides = array<i32>} : memref<8x256xf32, #tpu.memory_space<vmem>>, vector<8x256xf32>,
    return
  }
  func.func @transform_0(%arg0: i32) -> (i32, i32) {
    %c0_i32 = arith.constant 0 : i32
    %c0_i32_0 = arith.constant 0 : i32
    return %arg0, %c0_i32 : i32, i32
  }
  func.func @transform_1(%arg0: i32) -> (i32, i32) {
    %c0_i32 = arith.constant 0 : i32
    %c0_i32_0 = arith.constant 0 : i32
    return %arg0, %c0_i32 : i32, i32
  }
}

</mosaic_0001>

<llo_original>
// kernel: tpu_custom_call.1
$region0: #{tpu_custom_call.1}
  #allocation0 [shape = 'u32[]', space=smem, size = 0x4, offset = 0x4, fixed_abs, tag = 'smem constant byte address 0x4 - core index']
  #allocation1 [shape = 'u32[144,128]{1,0:T(1,128)}', space=vmem, size = 0x12000, scoped, tag = 'internal scratch']
  %s0 = inlined_call_operand.hbm [shape: f32[8,256], index: 0, kind: input, shape index: {}]
  %s1 = inlined_call_operand.hbm [shape: f32[8,256], index: 1, kind: output, shape index: {}]
  %s2 = sld [smem:[#allocation0]]
  $region18: #{tpu_custom_call.1} parent=0
    _
  %s4 = ssub.s32 1, %s2
  %s5 = scalar_select 0, %s4, %s2
  $region1: #{tpu_custom_call.1} parent=0
    #allocation2 [shape = 'u8[8192]{0}', space=vmem, size = 0x2000, scoped, tag = 'input window, operand 0, single buffered']
    #allocation3 [shape = 's32[1]{0}', space=sflag, size = 0x4, scoped, tag = 'scoped memory for tpu_custom_call.1']
    #allocation4 [shape = 's32[1]{0}', space=sflag, size = 0x4, scoped, tag = 'scoped memory for tpu_custom_call.1']
    #allocation5 [shape = 'u8[8192]{0}', space=vmem, size = 0x2000, scoped, tag = 'output window, operand 0, single buffered']
    %6 = vsyncpa [#allocation3], 0
    %7 = vsyncpa [#allocation4], 0
    // Predicated region
    $region2: #{tpu_custom_call.1} parent=1 // pred_check
      _
    $region3: #{tpu_custom_call.1} parent=1 // pred_check_branch
      %9 = sbr.rel (0) target = $region5
    $region4: #{tpu_custom_call.1} parent=1 // pred_region
      %s11 = ssub.s32 256, 256
      %12 = vsyncadd [#allocation3], %s11
      %s14 = sshll.u32 [#allocation2], 4
      %s15 = int_to_ptr.vmem [resolvable:$true] %s14
      %17 = dma.hbm_to_vmem [thread:$0]  %s0, 256, %s15, [#allocation3]
    $region5: #{tpu_custom_call.1} parent=1 // pred_fallthru
      _
    // Predicated region
    $region6: #{tpu_custom_call.1} parent=1 // pred_check
      _
    $region7: #{tpu_custom_call.1} parent=1 // pred_check_branch
      %19 = sbr.rel (0) target = $region9
    $region8: #{tpu_custom_call.1} parent=1 // pred_region
      %20 = dma.done [#allocation3], 256
    $region9: #{tpu_custom_call.1} parent=1 // pred_fallthru
      _
    %v21 = vld [vmem:[#allocation2] sm:$0xff]
    %v22 = vld [vmem:[#allocation2 + $0x8] sm:$0xff]
    %23 = vst [vmem:[#allocation5] sm:$0xff] %v21
    %24 = vst [vmem:[#allocation5 + $0x8] sm:$0xff] %v22
    // Predicated region
    $region10: #{tpu_custom_call.1} parent=1 // pred_check
      _
    $region11: #{tpu_custom_call.1} parent=1 // pred_check_branch
      %26 = sbr.rel (0) target = $region13
    $region12: #{tpu_custom_call.1} parent=1 // pred_region
      %s28 = ssub.s32 256, 256
      %29 = vsyncadd [#allocation4], %s28
      %s31 = sshll.u32 [#allocation5], 4
      %s32 = int_to_ptr.vmem [resolvable:$true] %s31
      %34 = dma.vmem_to_hbm [thread:$0]  %s32, 256, %s1, [#allocation4]
    $region13: #{tpu_custom_call.1} parent=1 // pred_fallthru
      _
    // Predicated region
    $region14: #{tpu_custom_call.1} parent=1 // pred_check
      _
    $region15: #{tpu_custom_call.1} parent=1 // pred_check_branch
      %36 = sbr.rel (0) target = $region17
    $region16: #{tpu_custom_call.1} parent=1 // pred_region
      %37 = dma.done [#allocation4], 256
    $region17: #{tpu_custom_call.1} parent=1 // pred_fallthru
      _
    %38 = vsyncpa [#allocation3], 1
    %39 = vsyncpa [#allocation4], 1

</llo_original>
